<compile_context>
chip_gen: v7x
topology: tpu7x:2x2x1
jax: 0.10.0
libtpu: 0.0.40
codegen_flags: <defaults>
</compile_context>

<pallas_src>
import functools

import jax
import jax.numpy as jnp
from jax.experimental import pallas as pl
from jax.experimental.pallas import tpu as pltpu

LANE = 128     # lane width  (last-dim alignment for HBM-written outputs)
SUBLANE = 8    # sublane width (batch-tile alignment)


def _round_up(x, m):
    return ((x + m - 1) // m) * m


def _cdiv(a, b):
    return (a + b - 1) // b


# ----------------------------------------------------------------------------
# Fused Pallas kernel: shared MLP -> (policy MLP, value MLP), all Linear+Tanh
# ----------------------------------------------------------------------------
def _fused_mlp_extractor_kernel(*refs, n_shared, n_pi, n_vf):
    """One grid step handles a (tb, D) feature tile.

    refs layout:
      [x_ref,
       (w, b) * n_shared, (w, b) * n_pi, (w, b) * n_vf,
       o_pi_ref, o_vf_ref]
    Weights are bf16 (true din, dout; only the final pi/vf dout is 128-padded),
    biases are f32 of shape (1, dout). Constant index_maps keep them resident
    in VMEM across the batch grid.
    """
    x_ref = refs[0]
    pos = 1
    chains = []
    for n in (n_shared, n_pi, n_vf):
        chain = []
        for _ in range(n):
            chain.append((refs[pos], refs[pos + 1]))
            pos += 2
        chains.append(chain)
    shared_p, pi_p, vf_p = chains
    o_pi_ref, o_vf_ref = refs[pos], refs[pos + 1]

    def run_chain(h, params):
        # h is f32; MXU operands in bf16, accumulate f32, bias+tanh in f32.
        for (w_ref, b_ref) in params:
            acc = jnp.dot(h.astype(jnp.bfloat16), w_ref[...],
                          preferred_element_type=jnp.float32)
            h = jnp.tanh(acc + b_ref[...])          # bias (1, dout) broadcasts
        return h

    def write_out(o_ref, h):
        # Last pi/vf layer dout is already 128-padded at weight-build time, so
        # this branch only triggers for empty pi/vf chains (shared latent
        # written directly): pad with zeros to keep the store lane-dense.
        if h.shape[-1] != o_ref.shape[-1]:
            pad = jnp.zeros((h.shape[0], o_ref.shape[-1] - h.shape[-1]),
                            h.dtype)
            h = jnp.concatenate([h, pad], axis=-1)
        o_ref[...] = h.astype(o_ref.dtype)

    h = x_ref[...].astype(jnp.float32)
    h = run_chain(h, shared_p)                      # shared latent stays in VMEM
    write_out(o_pi_ref, run_chain(h, pi_p))
    write_out(o_vf_ref, run_chain(h, vf_p))


# ----------------------------------------------------------------------------
# Parameter init (mimics nn.Linear default: U(-1/sqrt(in), 1/sqrt(in)))
# ----------------------------------------------------------------------------
def init_linear_params(key, in_dim, out_dim, dtype=jnp.float32):
    kw, kb = jax.random.split(key)
    bound = 1.0 / (in_dim ** 0.5)
    w = jax.random.uniform(kw, (out_dim, in_dim), dtype, -bound, bound)
    b = jax.random.uniform(kb, (out_dim,), dtype, -bound, bound)
    return w, b


class MlpExtractorPallas:
    """JAX/Pallas re-implementation of MlpExtractor.forward (single fused kernel)."""

    def __init__(self, feature_dim, net_arch, key, max_batch_tile=2048):
        self.feature_dim = feature_dim
        self.max_batch_tile = max_batch_tile

        # ---- parse net_arch (same semantics as the PyTorch module) ----
        shared_dims, policy_only, value_only = [], [], []
        last = feature_dim
        for layer in net_arch:
            if isinstance(layer, int):
                shared_dims.append((last, layer))
                last = layer
            else:
                assert isinstance(layer, dict), \
                    "net_arch can only contain ints and dicts"
                policy_only = list(layer.get("pi", []))
                value_only = list(layer.get("vf", []))
                break

        pi_dims, vf_dims = [], []
        lp = lv = last
        for p in policy_only:
            pi_dims.append((lp, p))
            lp = p
        for v in value_only:
            vf_dims.append((lv, v))
            lv = v
        self.latent_dim_pi = lp
        self.latent_dim_vf = lv

        # ---- build params: raw f32 (reference) + bf16 kernel weights ----
        def build(pairs, key, pad_last_out):
            raw, packed = [], []
            n = len(pairs)
            for idx, (din, dout) in enumerate(pairs):
                key, sub = jax.random.split(key)
                w, b = init_linear_params(sub, din, dout, jnp.float32)
                w_t = w.T                                   # (din, dout) for x @ W
                raw.append((w_t, b))
                # Only layers whose output goes to HBM (last pi / vf layer) get
                # a 128-padded dout; all contraction dims stay at true size.
                dout_p = _round_up(dout, LANE) if (pad_last_out and idx == n - 1) \
                    else dout
                w_k = jnp.zeros((din, dout_p), jnp.bfloat16)
                w_k = w_k.at[:, :dout].set(w_t.astype(jnp.bfloat16))
                b_k = jnp.zeros((1, dout_p), jnp.float32).at[0, :dout].set(b)
                packed.append((w_k, b_k))
            return raw, packed, key

        self.shared_raw, self.shared_k, key = build(shared_dims, key, False)
        self.pi_raw, self.pi_k, key = build(pi_dims, key, True)
        self.vf_raw, self.vf_k, key = build(vf_dims, key, True)

        self.pi_out_pad = _round_up(self.latent_dim_pi, LANE)
        self.vf_out_pad = _round_up(self.latent_dim_vf, LANE)

        # jit the whole forward (pallas_call + slices) -> one dispatch per call.
        self._jit_forward = jax.jit(self._forward)

    # ------------------------------------------------------------------
    def _batch_tile(self, B):
        tb = min(self.max_batch_tile, _round_up(B, SUBLANE))
        # Guarantee >= 2 grid steps once the batch is big enough to split, so
        # the "parallel" batch axis can shard across v7x's 2 TensorCores
        # (no-op on single-TC v5e/v6e).
        if B >= 2 * SUBLANE and _cdiv(B, tb) < 2:
            tb = _round_up(_cdiv(B, 2), SUBLANE)
        return tb

    def forward(self, features):
        return self._jit_forward(features)

    def _forward(self, features):
        B, D = features.shape
        assert D == self.feature_dim

        tb = self._batch_tile(B)
        grid = (_cdiv(B, tb),)

        # Flatten all (weight, bias) pairs into pallas inputs with constant
        # index_maps (full-array blocks -> loaded once, resident in VMEM).
        # TODO(synk): use pipeline_mode=pl.Buffered(1) on these resident
        # operands if net_arch widths grow enough for double-buffered weights
        # to matter against the 64 MiB v7x VMEM budget.
        param_arrays, param_specs = [], []
        for (w, b) in self.shared_k + self.pi_k + self.vf_k:
            param_arrays += [w, b]
            param_specs += [
                pl.BlockSpec(w.shape, lambda i: (0, 0)),
                pl.BlockSpec(b.shape, lambda i: (0, 0)),
            ]

        kernel = functools.partial(
            _fused_mlp_extractor_kernel,
            n_shared=len(self.shared_k),
            n_pi=len(self.pi_k),
            n_vf=len(self.vf_k),
        )

        out_dtype = features.dtype
        latent_pi_p, latent_vf_p = pl.pallas_call(
            kernel,
            out_shape=(
                jax.ShapeDtypeStruct((B, self.pi_out_pad), out_dtype),
                jax.ShapeDtypeStruct((B, self.vf_out_pad), out_dtype),
            ),
            grid=grid,
            # x streamed at its true (B, D) shape: last block dim == full dim,
            # partial last batch block handled by Pallas (garbage rows beyond B
            # never reach the (B, ...) outputs).
            in_specs=[pl.BlockSpec((tb, D), lambda i: (i, 0))] + param_specs,
            out_specs=(
                pl.BlockSpec((tb, self.pi_out_pad), lambda i: (i, 0)),
                pl.BlockSpec((tb, self.vf_out_pad), lambda i: (i, 0)),
            ),
            compiler_params=pltpu.CompilerParams(
                dimension_semantics=("parallel",),
            ),
        )(features, *param_arrays)

        return (latent_pi_p[:, :self.latent_dim_pi],
                latent_vf_p[:, :self.latent_dim_vf])


# ----------------------------------------------------------------------------
# Pure-JAX reference (unpadded f32 params) for correctness check
# ----------------------------------------------------------------------------
def ref_forward(model, x):
    def run(params, h):
        for (w_t, b) in params:
            h = jnp.tanh(h @ w_t + b)
        return h

    s = run(model.shared_raw, x)
    return run(model.pi_raw, s), run(model.vf_raw, s)


if __name__ == "__main__":
    key = jax.random.PRNGKey(0)
    k_in, k_params = jax.random.split(key)

    batch, feature_dim = 2, 16
    net_arch = [32, dict(pi=[32], vf=[16])]

    model = MlpExtractorPallas(feature_dim, net_arch, k_params)
    x = jax.random.normal(k_in, (batch, feature_dim), dtype=jnp.float32)

    latent_pi, latent_vf = model.forward(x)
    jax.block_until_ready((latent_pi, latent_vf))

    ref_pi, ref_vf = ref_forward(model, x)
    assert latent_pi.shape == (batch, model.latent_dim_pi)
    assert latent_vf.shape == (batch, model.latent_dim_vf)
    # bf16 MXU operands (f32 accumulate, f32 bias/tanh) -> loosened tolerance.
    assert jnp.allclose(latent_pi, ref_pi, atol=3e-2, rtol=3e-2)
    assert jnp.allclose(latent_vf, ref_vf, atol=3e-2, rtol=3e-2)

    print("KERNEL_OK")
</pallas_src>

<mosaic_0001>
module attributes {stable_mosaic.version = 11 : i64} {
  func.func @_fused_mlp_extractor_kernel(%arg0: i32, %arg1: memref<8x16xf32, #tpu.memory_space<vmem>>, %arg2: memref<16x32xbf16, #tpu.memory_space<vmem>>, %arg3: memref<1x32xf32, #tpu.memory_space<vmem>>, %arg4: memref<32x128xbf16, #tpu.memory_space<vmem>>, %arg5: memref<1x128xf32, #tpu.memory_space<vmem>>, %arg6: memref<32x128xbf16, #tpu.memory_space<vmem>>, %arg7: memref<1x128xf32, #tpu.memory_space<vmem>>, %arg8: memref<8x128xf32, #tpu.memory_space<vmem>>, %arg9: memref<8x128xf32, #tpu.memory_space<vmem>>) attributes {dimension_semantics = [#tpu.dimension_semantics<parallel>], iteration_bounds = array<i64: 1>, scalar_prefetch = 0 : i64, scratch_operands = 0 : i64, tpu.core_type = #tpu.core_type<tc>, window_params = [{transform_indices = @transform_0, window_bounds = array<i64: 8, 16>}, {pipeline_mode = #tpu.pipeline_mode<synchronous>, transform_indices = @transform_1, window_bounds = array<i64: 16, 32>}, {pipeline_mode = #tpu.pipeline_mode<synchronous>, transform_indices = @transform_2, window_bounds = array<i64: 1, 32>}, {pipeline_mode = #tpu.pipeline_mode<synchronous>, transform_indices = @transform_3, window_bounds = array<i64: 32, 128>}, {pipeline_mode = #tpu.pipeline_mode<synchronous>, transform_indices = @transform_4, window_bounds = array<i64: 1, 128>}, {pipeline_mode = #tpu.pipeline_mode<synchronous>, transform_indices = @transform_5, window_bounds = array<i64: 32, 128>}, {pipeline_mode = #tpu.pipeline_mode<synchronous>, transform_indices = @transform_6, window_bounds = array<i64: 1, 128>}, {transform_indices = @transform_7, window_bounds = array<i64: 8, 128>}, {transform_indices = @transform_8, window_bounds = array<i64: 8, 128>}]} {
    %c0 = arith.constant 0 : index
    %c0_0 = arith.constant 0 : index
    %0 = vector.load %arg1[%c0, %c0_0] : memref<8x16xf32, #tpu.memory_space<vmem>>, vector<8x16xf32>
    %1 = arith.truncf %0 : vector<8x16xf32> to vector<8x16xbf16>
    %c0_1 = arith.constant 0 : index
    %c0_2 = arith.constant 0 : index
    %2 = vector.load %arg2[%c0_1, %c0_2] : memref<16x32xbf16, #tpu.memory_space<vmem>>, vector<16x32xbf16>
    %cst = arith.constant dense<0.000000e+00> : vector<8x32xf32>
    %3 = tpu.matmul %1, %2, %cst {dimension_numbers = #tpu.dot_dimension_numbers<[1], [0], [0], [1], [0, 0, 1, 1], [], []>} : vector<8x16xbf16>, vector<16x32xbf16>, vector<8x32xf32> -> vector<8x32xf32>
    %c0_3 = arith.constant 0 : index
    %c0_4 = arith.constant 0 : index
    %4 = vector.load %arg3[%c0_3, %c0_4] : memref<1x32xf32, #tpu.memory_space<vmem>>, vector<1x32xf32>
    %5 = vector.broadcast %4 : vector<1x32xf32> to vector<8x32xf32>
    %6 = arith.addf %3, %5 : vector<8x32xf32>
    %7 = math.tanh %6 : vector<8x32xf32>
    %8 = arith.truncf %7 : vector<8x32xf32> to vector<8x32xbf16>
    %c0_5 = arith.constant 0 : index
    %c0_6 = arith.constant 0 : index
    %9 = vector.load %arg4[%c0_5, %c0_6] : memref<32x128xbf16, #tpu.memory_space<vmem>>, vector<32x128xbf16>
    %cst_7 = arith.constant dense<0.000000e+00> : vector<8x128xf32>
    %10 = tpu.matmul %8, %9, %cst_7 {dimension_numbers = #tpu.dot_dimension_numbers<[1], [0], [0], [1], [0, 0, 1, 1], [], []>} : vector<8x32xbf16>, vector<32x128xbf16>, vector<8x128xf32> -> vector<8x128xf32>
    %c0_8 = arith.constant 0 : index
    %c0_9 = arith.constant 0 : index
    %11 = vector.load %arg5[%c0_8, %c0_9] : memref<1x128xf32, #tpu.memory_space<vmem>>, vector<1x128xf32>
    %12 = vector.broadcast %11 : vector<1x128xf32> to vector<8x128xf32>
    %13 = arith.addf %10, %12 : vector<8x128xf32>
    %14 = math.tanh %13 : vector<8x128xf32>
    %c0_10 = arith.constant 0 : index
    %c0_11 = arith.constant 0 : index
    %15 = vector.load %arg8[%c0_10, %c0_11] : memref<8x128xf32, #tpu.memory_space<vmem>>, vector<8x128xf32>
    tpu.vector_store %arg8[%c0_10, %c0_11], %14 {strides = array<i32>} : memref<8x128xf32, #tpu.memory_space<vmem>>, vector<8x128xf32>,
    %16 = arith.truncf %7 : vector<8x32xf32> to vector<8x32xbf16>
    %c0_12 = arith.constant 0 : index
    %c0_13 = arith.constant 0 : index
    %17 = vector.load %arg6[%c0_12, %c0_13] : memref<32x128xbf16, #tpu.memory_space<vmem>>, vector<32x128xbf16>
    %cst_14 = arith.constant dense<0.000000e+00> : vector<8x128xf32>
    %18 = tpu.matmul %16, %17, %cst_14 {dimension_numbers = #tpu.dot_dimension_numbers<[1], [0], [0], [1], [0, 0, 1, 1], [], []>} : vector<8x32xbf16>, vector<32x128xbf16>, vector<8x128xf32> -> vector<8x128xf32>
    %c0_15 = arith.constant 0 : index
    %c0_16 = arith.constant 0 : index
    %19 = vector.load %arg7[%c0_15, %c0_16] : memref<1x128xf32, #tpu.memory_space<vmem>>, vector<1x128xf32>
    %20 = vector.broadcast %19 : vector<1x128xf32> to vector<8x128xf32>
    %21 = arith.addf %18, %20 : vector<8x128xf32>
    %22 = math.tanh %21 : vector<8x128xf32>
    %c0_17 = arith.constant 0 : index
    %c0_18 = arith.constant 0 : index
    %23 = vector.load %arg9[%c0_17, %c0_18] : memref<8x128xf32, #tpu.memory_space<vmem>>, vector<8x128xf32>
    tpu.vector_store %arg9[%c0_17, %c0_18], %22 {strides = array<i32>} : memref<8x128xf32, #tpu.memory_space<vmem>>, vector<8x128xf32>,
    return
  }
  func.func @transform_0(%arg0: i32) -> (i32, i32) {
    %c0_i32 = arith.constant 0 : i32
    %c0_i32_0 = arith.constant 0 : i32
    return %arg0, %c0_i32 : i32, i32
  }
  func.func @transform_1(%arg0: i32) -> (i32, i32) {
    %c0_i32 = arith.constant 0 : i32
    %c0_i32_0 = arith.constant 0 : i32
    %c0_i32_1 = arith.constant 0 : i32
    return %c0_i32, %c0_i32_0 : i32, i32
  }
  func.func @transform_2(%arg0: i32) -> (i32, i32) {
    %c0_i32 = arith.constant 0 : i32
    %c0_i32_0 = arith.constant 0 : i32
    %c0_i32_1 = arith.constant 0 : i32
    return %c0_i32, %c0_i32_0 : i32, i32
  }
  func.func @transform_3(%arg0: i32) -> (i32, i32) {
    %c0_i32 = arith.constant 0 : i32
    %c0_i32_0 = arith.constant 0 : i32
    %c0_i32_1 = arith.constant 0 : i32
    return %c0_i32, %c0_i32_0 : i32, i32
  }
  func.func @transform_4(%arg0: i32) -> (i32, i32) {
    %c0_i32 = arith.constant 0 : i32
    %c0_i32_0 = arith.constant 0 : i32
    %c0_i32_1 = arith.constant 0 : i32
    return %c0_i32, %c0_i32_0 : i32, i32
  }
  func.func @transform_5(%arg0: i32) -> (i32, i32) {
    %c0_i32 = arith.constant 0 : i32
    %c0_i32_0 = arith.constant 0 : i32
    %c0_i32_1 = arith.constant 0 : i32
    return %c0_i32, %c0_i32_0 : i32, i32
  }
  func.func @transform_6(%arg0: i32) -> (i32, i32) {
    %c0_i32 = arith.constant 0 : i32
    %c0_i32_0 = arith.constant 0 : i32
    %c0_i32_1 = arith.constant 0 : i32
    return %c0_i32, %c0_i32_0 : i32, i32
  }
  func.func @transform_7(%arg0: i32) -> (i32, i32) {
    %c0_i32 = arith.constant 0 : i32
    %c0_i32_0 = arith.constant 0 : i32
    return %arg0, %c0_i32 : i32, i32
  }
  func.func @transform_8(%arg0: i32) -> (i32, i32) {
    %c0_i32 = arith.constant 0 : i32
    %c0_i32_0 = arith.constant 0 : i32
    return %arg0, %c0_i32 : i32, i32
  }
}

</mosaic_0001>

<llo_original>
// kernel: _forward.1
$region0: #{_forward.1}
  #allocation0 [shape = 'u32[]', space=smem, size = 0x4, offset = 0x4, fixed_abs, tag = 'smem constant byte address 0x4 - core index']
  #allocation1 [shape = 'u32[144,128]{1,0:T(1,128)}', space=vmem, size = 0x12000, scoped, tag = 'internal scratch']
  %s0 = inlined_call_operand.vmem [shape: f32[2,16], index: 0, kind: input, shape index: {}]
  %s1 = inlined_call_operand.vmem [shape: bf16[16,32], index: 1, kind: input, shape index: {}]
  %s2 = inlined_call_operand.vmem [shape: f32[1,32], index: 2, kind: input, shape index: {}]
  %s3 = inlined_call_operand.hbm [shape: bf16[32,128], index: 3, kind: input, shape index: {}]
  %s4 = inlined_call_operand.vmem [shape: f32[1,128], index: 4, kind: input, shape index: {}]
  %s5 = inlined_call_operand.vmem [shape: bf16[32,128], index: 5, kind: input, shape index: {}]
  %s6 = inlined_call_operand.vmem [shape: f32[1,128], index: 6, kind: input, shape index: {}]
  %s7 = inlined_call_operand.hbm [shape: f32[2,128], index: 7, kind: output, shape index: {0}]
  %s8 = inlined_call_operand.hbm [shape: f32[2,128], index: 8, kind: output, shape index: {1}]
  %9 = xla_tuple %s7, %s8
  %s10 = sld [smem:[#allocation0]]
  $region50: #{_forward.1} parent=0
    _
  %s12 = ssub.s32 1, %s10
  %s13 = scalar_select 0, %s12, %s10
  $region1: #{_forward.1} parent=0
    #allocation2 [shape = 'u8[8192]{0}', space=vmem, size = 0x2000, scoped, tag = 'input window, operand 3, single buffered']
    #allocation3 [shape = 's32[1]{0}', space=sflag, size = 0x4, scoped, tag = 'scoped memory for _forward.1']
    #allocation4 [shape = 's32[1]{0}', space=sflag, size = 0x4, scoped, tag = 'scoped memory for _forward.1']
    #allocation5 [shape = 'u8[4096]{0}', space=vmem, size = 0x1000, scoped, tag = 'output window, operand 0, single buffered']
    #allocation6 [shape = 'u8[4096]{0}', space=vmem, size = 0x1000, scoped, tag = 'output window, operand 1, single buffered']
    #allocation7 [shape = 's32[1]{0}', space=sflag, size = 0x4, scoped, tag = 'scoped memory for _forward.1']
    %14 = vsyncpa [#allocation3], 0
    %15 = vsyncpa [#allocation4], 0
    %16 = vsyncpa [#allocation7], 0
    // Predicated region
    $region2: #{_forward.1} parent=1 // pred_check
      _
    $region3: #{_forward.1} parent=1 // pred_check_branch
      %18 = sbr.rel (0) target = $region5
    $region4: #{_forward.1} parent=1 // pred_region
      _
    $region5: #{_forward.1} parent=1 // pred_fallthru
      _
    // Predicated region
    $region6: #{_forward.1} parent=1 // pred_check
      _
    $region7: #{_forward.1} parent=1 // pred_check_branch
      %20 = sbr.rel (0) target = $region9
    $region8: #{_forward.1} parent=1 // pred_region
      _
    $region9: #{_forward.1} parent=1 // pred_fallthru
      _
    // Predicated region
    $region10: #{_forward.1} parent=1 // pred_check
      _
    $region11: #{_forward.1} parent=1 // pred_check_branch
      %22 = sbr.rel (0) target = $region13
    $region12: #{_forward.1} parent=1 // pred_region
      _
    $region13: #{_forward.1} parent=1 // pred_fallthru
      _
    // Predicated region
    $region14: #{_forward.1} parent=1 // pred_check
      _
    $region15: #{_forward.1} parent=1 // pred_check_branch
      %24 = sbr.rel (0) target = $region17
    $region16: #{_forward.1} parent=1 // pred_region
      %s26 = ssub.s32 256, 256
      %27 = vsyncadd [#allocation3], %s26
      %s28 = sshll.u32 [#allocation2], 4
      %s29 = int_to_ptr.vmem [resolvable:$true] %s28
      %34 = dma.hbm_to_vmem [thread:$0]  %s3, 256, %s29, [#allocation3], 64, 64, 4
    $region17: #{_forward.1} parent=1 // pred_fallthru
      _
    // Predicated region
    $region18: #{_forward.1} parent=1 // pred_check
      _
    $region19: #{_forward.1} parent=1 // pred_check_branch
      %36 = sbr.rel (0) target = $region21
    $region20: #{_forward.1} parent=1 // pred_region
      _
    $region21: #{_forward.1} parent=1 // pred_fallthru
      _
    // Predicated region
    $region22: #{_forward.1} parent=1 // pred_check
      _
    $region23: #{_forward.1} parent=1 // pred_check_branch
      %38 = sbr.rel (0) target = $region25
    $region24: #{_forward.1} parent=1 // pred_region
      _
    $region25: #{_forward.1} parent=1 // pred_fallthru
      _
    // Predicated region
    $region26: #{_forward.1} parent=1 // pred_check
      _
    $region27: #{_forward.1} parent=1 // pred_check_branch
      %40 = sbr.rel (0) target = $region29
    $region28: #{_forward.1} parent=1 // pred_region
      _
    $region29: #{_forward.1} parent=1 // pred_fallthru
      _
    // Predicated region
    $region30: #{_forward.1} parent=1 // pred_check
      _
    $region31: #{_forward.1} parent=1 // pred_check_branch
      %42 = sbr.rel (0) target = $region33
    $region32: #{_forward.1} parent=1 // pred_region
      %43 = dma.done [#allocation3], 256
    $region33: #{_forward.1} parent=1 // pred_fallthru
      _
    %v45 = vld [vmem:[%s0] sm:$0xff]
    %v46 = vpack.c.bf16 %v45, %v45
    %v47 = vld [vmem:[%s1] sm:$0xf]
    %v48 = vld [vmem:[%s1 + $0x4] sm:$0xf]
    %v49 = vld [vmem:[%s2] sm:$0x1]
    %v51 = vlaneseq
    %v52 = vshrl.u32 %v51, 7
    %v53 = vsub.s32 0, %v52
    %v54 = vrot.slane %v49, %v53
    %v58 = vunpack.c.l.b16 %v47
    %v59 = vunpack.c.l.b16 %v48
    %v60 = vpack.c.b16 %v59, %v58
    %vm62 = vcmask 130048
    %v64 = vsel %vm62, %v46, 0
    %66 = vmatprep.subr.bf16.mxu0 0
    %67 = vmatpush1.bf16.msra.mxu0 %v60
    %68 = vmatprep.subr.bf16.mxu0 0
    %69 = vmatpush1.bf16.msra.mxu0 0
    %70 = vmatprep.subr.bf16.mxu0 0
    %71 = vmatpush1.bf16.msra.mxu0 0
    %72 = vmatprep.subr.bf16.mxu0 0
    %73 = vmatpush1.bf16.msra.mxu0 0
    %74 = vmatprep.subr.bf16.mxu0 0
    %75 = vmatpush1.bf16.msra.mxu0 0
    %76 = vmatprep.subr.bf16.mxu0 0
    %77 = vmatpush1.bf16.msra.mxu0 0
    %78 = vmatprep.subr.bf16.mxu0 0
    %79 = vmatpush1.bf16.msra.mxu0 0
    %80 = vmatprep.subr.bf16.mxu0 0
    %81 = vmatpush1.bf16.msra.mxu0 0
    %82 = vmatprep.subr.bf16.mxu0 0
    %83 = vmatpush1.bf16.msra.mxu0 0
    %84 = vmatprep.subr.bf16.mxu0 0
    %85 = vmatpush1.bf16.msra.mxu0 0
    %86 = vmatprep.subr.bf16.mxu0 0
    %87 = vmatpush1.bf16.msra.mxu0 0
    %88 = vmatprep.subr.bf16.mxu0 0
    %89 = vmatpush1.bf16.msra.mxu0 0
    %90 = vmatprep.subr.bf16.mxu0 0
    %91 = vmatpush1.bf16.msra.mxu0 0
    %92 = vmatprep.subr.bf16.mxu0 0
    %93 = vmatpush1.bf16.msra.mxu0 0
    %94 = vmatprep.subr.bf16.mxu0 0
    %95 = vmatpush1.bf16.msra.mxu0 0
    %96 = vmatprep.subr.bf16.mxu0 0
    %97 = vmatpush1.bf16.msra.mxu0 0
    %98 = vmatprep.mubr.bf16.mxu0 0
    %99 = vmatmul.mubr.bf16.gmra.mrb[0].mxu0 %v64
    %v100 = vpop.f32.mrb[0].mxu0
    %v101 = vadd.f32 %v54, %v100
    %v102 = vpop.f32.mrb[0].mxu0
    %v103 = vpop.f32.mrb[0].mxu0
    %v104 = vpop.f32.mrb[0].mxu0
    %105 = vdwg.mxu0
    %v106 = vtanh.pop %v101
    %v107 = vpack.c.bf16 %v106, %v106
    %v108 = vld [vmem:[#allocation2] sm:$0xf]
    %v109 = vld [vmem:[#allocation2 + $0x4] sm:$0xf]
    %v110 = vld [vmem:[#allocation2 + $0x8] sm:$0xf]
    %v111 = vld [vmem:[#allocation2 + $0xc] sm:$0xf]
    %v112 = vld [vmem:[%s4] sm:$0x1]
    %v114 = vlaneseq
    %v115 = vshrl.u32 %v114, 7
    %v116 = vsub.s32 0, %v115
    %v117 = vrot.slane %v112, %v116
    %v123 = vunpack.c.l.b16 %v108
    %v124 = vunpack.c.l.b16 %v109
    %v125 = vunpack.c.l.b16 %v110
    %v126 = vunpack.c.l.b16 %v111
    %v127 = vpack.c.b16 %v124, %v123
    %v128 = vpack.c.b16 %v126, %v125
    %vm131 = vcmask 261120
    %v133 = vsel %vm131, %v107, 0
    %135 = vmatprep.subr.bf16.mxu0 0
    %136 = vmatpush1.bf16.msra.mxu0 %v127
    %137 = vmatprep.subr.bf16.mxu0 0
    %138 = vmatpush1.bf16.msra.mxu0 %v128
    %139 = vmatprep.subr.bf16.mxu0 0
    %140 = vmatpush1.bf16.msra.mxu0 0
    %141 = vmatprep.subr.bf16.mxu0 0
    %142 = vmatpush1.bf16.msra.mxu0 0
    %143 = vmatprep.subr.bf16.mxu0 0
    %144 = vmatpush1.bf16.msra.mxu0 0
    %145 = vmatprep.subr.bf16.mxu0 0
    %146 = vmatpush1.bf16.msra.mxu0 0
    %147 = vmatprep.subr.bf16.mxu0 0
    %148 = vmatpush1.bf16.msra.mxu0 0
    %149 = vmatprep.subr.bf16.mxu0 0
    %150 = vmatpush1.bf16.msra.mxu0 0
    %151 = vmatprep.subr.bf16.mxu0 0
    %152 = vmatpush1.bf16.msra.mxu0 0
    %153 = vmatprep.subr.bf16.mxu0 0
    %154 = vmatpush1.bf16.msra.mxu0 0
    %155 = vmatprep.subr.bf16.mxu0 0
    %156 = vmatpush1.bf16.msra.mxu0 0
    %157 = vmatprep.subr.bf16.mxu0 0
    %158 = vmatpush1.bf16.msra.mxu0 0
    %159 = vmatprep.subr.bf16.mxu0 0
    %160 = vmatpush1.bf16.msra.mxu0 0
    %161 = vmatprep.subr.bf16.mxu0 0
    %162 = vmatpush1.bf16.msra.mxu0 0
    %163 = vmatprep.subr.bf16.mxu0 0
    %164 = vmatpush1.bf16.msra.mxu0 0
    %165 = vmatprep.subr.bf16.mxu0 0
    %166 = vmatpush1.bf16.msra.mxu0 0
    %167 = vmatprep.mubr.bf16.mxu0 0
    %168 = vmatmul.mubr.bf16.gmra.mrb[0].mxu0 %v133
    %v169 = vpop.f32.mrb[0].mxu0
    %v170 = vadd.f32 %v117, %v169
    %v171 = vpop.f32.mrb[0].mxu0
    %v172 = vpop.f32.mrb[0].mxu0
    %v173 = vpop.f32.mrb[0].mxu0
    %174 = vdwg.mxu0
    %v175 = vtanh.pop %v170
    %176 = vst [vmem:[#allocation5] sm:$0xff] %v175
    %v177 = vld [vmem:[%s5] sm:$0xf]
    %v178 = vld [vmem:[%s5 + $0x4] sm:$0xf]
    %v179 = vld [vmem:[%s5 + $0x8] sm:$0xf]
    %v180 = vld [vmem:[%s5 + $0xc] sm:$0xf]
    %v181 = vld [vmem:[%s6] sm:$0x1]
    %v183 = vlaneseq
    %v184 = vshrl.u32 %v183, 7
    %v185 = vsub.s32 0, %v184
    %v186 = vrot.slane %v181, %v185
    %v192 = vunpack.c.l.b16 %v177
    %v193 = vunpack.c.l.b16 %v178
    %v194 = vunpack.c.l.b16 %v179
    %v195 = vunpack.c.l.b16 %v180
    %v196 = vpack.c.b16 %v193, %v192
    %v197 = vpack.c.b16 %v195, %v194
    %200 = vmatprep.subr.bf16.mxu0 0
    %201 = vmatpush1.bf16.msra.mxu0 %v196
    %202 = vmatprep.subr.bf16.mxu0 0
    %203 = vmatpush1.bf16.msra.mxu0 %v197
    %204 = vmatprep.subr.bf16.mxu0 0
    %205 = vmatpush1.bf16.msra.mxu0 0
    %206 = vmatprep.subr.bf16.mxu0 0
    %207 = vmatpush1.bf16.msra.mxu0 0
    %208 = vmatprep.subr.bf16.mxu0 0
    %209 = vmatpush1.bf16.msra.mxu0 0
    %210 = vmatprep.subr.bf16.mxu0 0
    %211 = vmatpush1.bf16.msra.mxu0 0
    %212 = vmatprep.subr.bf16.mxu0 0
    %213 = vmatpush1.bf16.msra.mxu0 0
    %214 = vmatprep.subr.bf16.mxu0 0
    %215 = vmatpush1.bf16.msra.mxu0 0
    %216 = vmatprep.subr.bf16.mxu0 0
    %217 = vmatpush1.bf16.msra.mxu0 0
    %218 = vmatprep.subr.bf16.mxu0 0
    %219 = vmatpush1.bf16.msra.mxu0 0
    %220 = vmatprep.subr.bf16.mxu0 0
    %221 = vmatpush1.bf16.msra.mxu0 0
    %222 = vmatprep.subr.bf16.mxu0 0
    %223 = vmatpush1.bf16.msra.mxu0 0
    %224 = vmatprep.subr.bf16.mxu0 0
    %225 = vmatpush1.bf16.msra.mxu0 0
    %226 = vmatprep.subr.bf16.mxu0 0
    %227 = vmatpush1.bf16.msra.mxu0 0
    %228 = vmatprep.subr.bf16.mxu0 0
    %229 = vmatpush1.bf16.msra.mxu0 0
    %230 = vmatprep.subr.bf16.mxu0 0
    %231 = vmatpush1.bf16.msra.mxu0 0
    %232 = vmatprep.mubr.bf16.mxu0 0
    %233 = vmatmul.mubr.bf16.gmra.mrb[0].mxu0 %v133
    %v234 = vpop.f32.mrb[0].mxu0
    %v235 = vadd.f32 %v186, %v234
    %v236 = vpop.f32.mrb[0].mxu0
    %v237 = vpop.f32.mrb[0].mxu0
    %v238 = vpop.f32.mrb[0].mxu0
    %239 = vdwg.mxu0
    %v240 = vtanh.pop %v235
    %241 = vst [vmem:[#allocation6] sm:$0xff] %v240
    // Predicated region
    $region34: #{_forward.1} parent=1 // pred_check
      _
    $region35: #{_forward.1} parent=1 // pred_check_branch
      %243 = sbr.rel (0) target = $region37
    $region36: #{_forward.1} parent=1 // pred_region
      %s245 = ssub.s32 128, 32
      %246 = vsyncadd [#allocation4], %s245
      %s247 = sshll.u32 [#allocation5], 4
      %s248 = int_to_ptr.vmem [resolvable:$true] %s247
      %253 = dma.vmem_to_hbm [thread:$0]  %s248, 32, %s7, [#allocation4], 32, 32, 2
    $region37: #{_forward.1} parent=1 // pred_fallthru
      _
    // Predicated region
    $region38: #{_forward.1} parent=1 // pred_check
      _
    $region39: #{_forward.1} parent=1 // pred_check_branch
      %255 = sbr.rel (0) target = $region41
    $region40: #{_forward.1} parent=1 // pred_region
      %s257 = ssub.s32 128, 32
      %258 = vsyncadd [#allocation7], %s257
      %s259 = sshll.u32 [#allocation6], 4
      %s260 = int_to_ptr.vmem [resolvable:$true] %s259
      %265 = dma.vmem_to_hbm [thread:$0]  %s260, 32, %s8, [#allocation7], 32, 32, 2
    $region41: #{_forward.1} parent=1 // pred_fallthru
      _
    // Predicated region
    $region42: #{_forward.1} parent=1 // pred_check
      _
    $region43: #{_forward.1} parent=1 // pred_check_branch
      %267 = sbr.rel (0) target = $region45
    $region44: #{_forward.1} parent=1 // pred_region
      %268 = dma.done [#allocation4], 128
    $region45: #{_forward.1} parent=1 // pred_fallthru
      _
    // Predicated region
    $region46: #{_forward.1} parent=1 // pred_check
      _
    $region47: #{_forward.1} parent=1 // pred_check_branch
      %270 = sbr.rel (0) target = $region49
    $region48: #{_forward.1} parent=1 // pred_region
      %271 = dma.done [#allocation7], 128
    $region49: #{_forward.1} parent=1 // pred_fallthru
      _
    %272 = vsyncpa [#allocation3], 1
    %273 = vsyncpa [#allocation4], 1
    %274 = vsyncpa [#allocation7], 1

</llo_original>
